<compile_context>
chip_gen: v6e
topology: v6e:2x2x1
jax: 0.10.0
libtpu: 0.0.40
codegen_flags: <defaults>
</compile_context>

<pallas_src>
import functools

import jax
import jax.numpy as jnp
from jax.experimental import pallas as pl
from jax.experimental.pallas import tpu as pltpu


def _round_up(x, m):
    return ((x + m - 1) // m) * m


def _detect_vmem_limit_bytes():
    """Scoped-VMEM limit derived from the chip's physical VMEM (v7x has 64 MiB)."""
    try:
        cap = int(pltpu.get_tpu_info().vmem_capacity_bytes)
    except Exception:
        cap = 64 << 20          # conservative (v7x-sized) fallback
    return min((cap * 3) // 4, 96 << 20)


_VMEM_LIMIT_BYTES = _detect_vmem_limit_bytes()
_TM_CAP = 512
_TN_CAP = 512
# Bigger K tiles when the chip has 128 MiB VMEM (v5e/v6e); 1024 on v7x.
_TK_CAP = 2048 if _VMEM_LIMIT_BYTES >= (64 << 20) else 1024


def _pick_tile(dim_aligned, unit, cap):
    """Largest tile <= cap that is a multiple of `unit` and divides dim_aligned.

    dim_aligned must already be a multiple of `unit`.  Prefers the full extent
    (single block) when it fits under the cap.
    """
    if dim_aligned <= cap:
        return dim_aligned
    best = unit
    t = unit * 2
    while t <= cap:
        if dim_aligned % t == 0:
            best = t
        t *= 2
    return best


# ----------------------------- kernels --------------------------------------


def _dlin_bias_kernel(x_ref, w_ref, b_ref, o_ref, acc_ref):
    # x_ref: [tm, tk]  w_ref: [tk, tn]  b_ref: [1, tn] (f32)  o_ref: [tm, tn]
    k = pl.program_id(2)

    @pl.when(k == 0)
    def _():
        acc_ref[...] = jnp.zeros_like(acc_ref)

    acc_ref[...] += jnp.dot(x_ref[...], w_ref[...],
                            preferred_element_type=jnp.float32)

    @pl.when(k == pl.num_programs(2) - 1)
    def _():
        o_ref[...] = (acc_ref[...]
                      + b_ref[...].astype(jnp.float32)).astype(o_ref.dtype)


def _dlin_nobias_kernel(x_ref, w_ref, o_ref, acc_ref):
    k = pl.program_id(2)

    @pl.when(k == 0)
    def _():
        acc_ref[...] = jnp.zeros_like(acc_ref)

    acc_ref[...] += jnp.dot(x_ref[...], w_ref[...],
                            preferred_element_type=jnp.float32)

    @pl.when(k == pl.num_programs(2) - 1)
    def _():
        o_ref[...] = acc_ref[...].astype(o_ref.dtype)


# ------------------------- jitted forward (cached) --------------------------


@functools.partial(
    jax.jit,
    static_argnames=("out_features", "tm", "tn", "tk", "use_buffered",
                     "vmem_limit"))
def _dynamic_linear_fwd(x, weight_t, bias_p, *, out_features, tm, tn, tk,
                        use_buffered, vmem_limit):
    batch, in_features = x.shape
    out_dtype = x.dtype
    compute_dtype = weight_t.dtype

    # Padded extents (tiles were chosen so these are the minimal 8/128-aligned
    # extents; pad cost is at most 7 rows / 127 columns of x).
    m_pad = _round_up(batch, tm)
    k_pad = _round_up(in_features, tk)
    n_pad = _round_up(out_features, tn)

    xk = x.astype(compute_dtype)
    if (m_pad, k_pad) != (batch, in_features):
        # Zero-padded K columns multiply the (nonzero) inactive weight rows by
        # zero, so correctness is preserved for any active in_features.
        xk = jnp.pad(xk, ((0, m_pad - batch), (0, k_pad - in_features)))

    grid = (m_pad // tm, n_pad // tn, k_pad // tk)

    x_spec = pl.BlockSpec((tm, tk), lambda i, j, k: (i, k))
    if use_buffered:
        # Weight-stream-bound regime: 3-deep pipelining on the weight tiles.
        w_spec = pl.BlockSpec((tk, tn), lambda i, j, k: (k, j),
                              pipeline_mode=pl.Buffered(3))
    else:
        w_spec = pl.BlockSpec((tk, tn), lambda i, j, k: (k, j))
    o_spec = pl.BlockSpec((tm, tn), lambda i, j, k: (i, j))

    in_bytes = jnp.dtype(compute_dtype).itemsize
    out_bytes = jnp.dtype(out_dtype).itemsize
    cost = pl.CostEstimate(
        flops=2 * m_pad * n_pad * k_pad,
        transcendentals=0,
        bytes_accessed=(m_pad * k_pad * in_bytes * (n_pad // tn)
                        + k_pad * n_pad * in_bytes * (m_pad // tm)
                        + m_pad * n_pad * out_bytes))

    compiler_params = pltpu.CompilerParams(
        dimension_semantics=("parallel", "parallel", "arbitrary"),
        vmem_limit_bytes=vmem_limit)

    out_shape = jax.ShapeDtypeStruct((m_pad, n_pad), out_dtype)
    scratch = [pltpu.VMEM((tm, tn), jnp.float32)]

    if bias_p is not None:
        b_spec = pl.BlockSpec((1, tn), lambda i, j, k: (0, j))
        y_pad = pl.pallas_call(
            _dlin_bias_kernel,
            out_shape=out_shape,
            grid_spec=pltpu.PrefetchScalarGridSpec(
                num_scalar_prefetch=0,
                grid=grid,
                in_specs=[x_spec, w_spec, b_spec],
                out_specs=o_spec,
                scratch_shapes=scratch),
            compiler_params=compiler_params,
            cost_estimate=cost,
        )(xk, weight_t, bias_p)
    else:
        y_pad = pl.pallas_call(
            _dlin_nobias_kernel,
            out_shape=out_shape,
            grid_spec=pltpu.PrefetchScalarGridSpec(
                num_scalar_prefetch=0,
                grid=grid,
                in_specs=[x_spec, w_spec],
                out_specs=o_spec,
                scratch_shapes=scratch),
            compiler_params=compiler_params,
            cost_estimate=cost,
        )(xk, weight_t)

    if (m_pad, n_pad) != (batch, out_features):
        y_pad = y_pad[:batch, :out_features]
    return y_pad


# ------------------------------- module -------------------------------------


class DynamicLinear:
    """JAX/Pallas port of the PyTorch DynamicLinear module."""

    def __init__(self, max_in_features, max_out_features, bias=True,
                 key=None, param_dtype=jnp.bfloat16):
        self.max_in_features = max_in_features
        self.max_out_features = max_out_features
        self.bias = bias
        self.active_out_features = max_out_features

        if key is None:
            key = jax.random.PRNGKey(0)
        kw, kb = jax.random.split(key)

        # Deterministic init mimicking nn.Linear's uniform(-1/sqrt(fan_in), ...)
        bound = 1.0 / (max_in_features ** 0.5)
        w = jax.random.uniform(
            kw, (max_out_features, max_in_features), jnp.float32, -bound, bound)

        # Store the weight ONCE: pre-transposed to [K, N] and zero-padded to
        # 128-aligned maxima so every block the grid can touch is in-bounds.
        k_store = _round_up(max_in_features, 128)
        n_store = _round_up(max_out_features, 128)
        wt = jnp.zeros((k_store, n_store), param_dtype)
        wt = wt.at[:max_in_features, :max_out_features].set(
            jnp.transpose(w, (1, 0)).astype(param_dtype))
        self.weight_t = wt                      # [K_store, N_store]

        if bias:
            b = jax.random.uniform(
                kb, (max_out_features,), jnp.float32, -bound, bound)
            bp = jnp.zeros((1, n_store), jnp.float32)
            self.bias_param = bp.at[0, :max_out_features].set(b)   # [1, N_store]
        else:
            self.bias_param = None

    # PyTorch-layout views (for reference checks).  Values are exactly the
    # stored (param_dtype) values, up-cast to f32.
    @property
    def weight(self):
        return jnp.transpose(
            self.weight_t[:self.max_in_features, :self.max_out_features],
            (1, 0)).astype(jnp.float32)

    @property
    def bias_vec(self):
        if self.bias_param is None:
            return None
        return self.bias_param[0, :self.max_out_features]

    def __call__(self, x, out_features=None):
        if out_features is None:
            out_features = self.active_out_features
        batch, in_features = x.shape
        assert in_features <= self.max_in_features
        assert out_features <= self.max_out_features

        # --- tile selection (quantized so repeated widths hit the jit cache) --
        m8 = _round_up(batch, 8)
        tm = m8 if m8 <= _TM_CAP else _TM_CAP
        k128 = _round_up(in_features, 128)
        n128 = _round_up(out_features, 128)
        tk = _pick_tile(k128, 128, _TK_CAP)
        tn = _pick_tile(n128, 128, _TN_CAP)

        m_grid = _round_up(batch, tm) // tm
        n_grid = n128 // tn
        # v7x has 2 TensorCores sharded over the "parallel" axes: keep >= 2
        # parallel blocks when the grid would otherwise collapse to 1x1.
        if m_grid == 1 and n_grid == 1 and n128 >= 256:
            tn = _pick_tile(n128, 128, n128 // 2)
            n_grid = n128 // tn

        k_grid = k128 // tk
        use_buffered = bool(k_grid >= 3 and m_grid == 1)

        kwargs = dict(out_features=int(out_features), tm=int(tm), tn=int(tn),
                      tk=int(tk), vmem_limit=int(_VMEM_LIMIT_BYTES))
        try:
            return _dynamic_linear_fwd(x, self.weight_t, self.bias_param,
                                       use_buffered=use_buffered, **kwargs)
        except Exception:
            if not use_buffered:
                raise
            # Fall back if Buffered(3) pipelining is rejected by this toolchain.
            return _dynamic_linear_fwd(x, self.weight_t, self.bias_param,
                                       use_buffered=False, **kwargs)


# -------------------------------- demo ---------------------------------------


if __name__ == "__main__":
    key = jax.random.PRNGKey(0)
    k_param, k_param2, k_x, k_x2 = jax.random.split(key, 4)

    # ---- Test 1: elastic in/out widths, bias, single-K-block fast path ------
    max_in, max_out = 768, 384
    batch = 16
    active_in = 640     # x has fewer features than max_in_features
    active_out = 320    # request fewer output features than max_out_features

    layer = DynamicLinear(max_in, max_out, bias=True, key=k_param)
    x = jax.random.normal(k_x, (batch, active_in), jnp.float32)

    y = jax.block_until_ready(layer(x, out_features=active_out))
    assert y.shape == (batch, active_out)

    # Reference with the same bf16 input rounding, f32 accumulation.
    x_lp = x.astype(jnp.bfloat16).astype(jnp.float32)
    w_ref = layer.weight[:active_out, :active_in]
    b_ref = layer.bias_vec[:active_out]
    y_ref = jnp.dot(x_lp, w_ref.T, precision=jax.lax.Precision.HIGHEST) + b_ref
    assert jnp.allclose(y, y_ref, atol=2e-3, rtol=2e-3), (
        float(jnp.max(jnp.abs(y - y_ref))))

    # ---- Test 2: default (active_out_features) path / full output width -----
    y_full = jax.block_until_ready(layer(x))
    y_full_ref = jnp.dot(x_lp, layer.weight[:, :active_in].T,
                         precision=jax.lax.Precision.HIGHEST) + layer.bias_vec
    assert y_full.shape == (batch, max_out)
    assert jnp.allclose(y_full, y_full_ref, atol=2e-3, rtol=2e-3)

    # ---- Test 3: multi-block K accumulation, no bias, buffered weight path --
    layer2 = DynamicLinear(2304, 256, bias=False, key=k_param2)
    x2 = jax.random.normal(k_x2, (8, 2304), jnp.float32)
    y2 = jax.block_until_ready(layer2(x2))
    x2_lp = x2.astype(jnp.bfloat16).astype(jnp.float32)
    y2_ref = jnp.dot(x2_lp, layer2.weight.T,
                     precision=jax.lax.Precision.HIGHEST)
    assert y2.shape == (8, 256)
    assert jnp.allclose(y2, y2_ref, atol=2e-3, rtol=2e-3), (
        float(jnp.max(jnp.abs(y2 - y2_ref))))

    print("KERNEL_OK")
</pallas_src>

<mosaic_0001>
module attributes {stable_mosaic.version = 11 : i64} {
  func.func @_dlin_bias_kernel(%arg0: i32, %arg1: i32, %arg2: i32, %arg3: memref<16x640xbf16, #tpu.memory_space<vmem>>, %arg4: memref<640x128xbf16, #tpu.memory_space<vmem>>, %arg5: memref<1x128xf32, #tpu.memory_space<vmem>>, %arg6: memref<16x128xf32, #tpu.memory_space<vmem>>, %arg7: memref<16x128xf32, #tpu.memory_space<vmem>>) attributes {dimension_semantics = [#tpu.dimension_semantics<parallel>, #tpu.dimension_semantics<parallel>, #tpu.dimension_semantics<arbitrary>], iteration_bounds = array<i64: 1, 3, 1>, scalar_prefetch = 0 : i64, scratch_operands = 1 : i64, tpu.core_type = #tpu.core_type<tc>, window_params = [{transform_indices = @transform_0, window_bounds = array<i64: 16, 640>}, {transform_indices = @transform_1, window_bounds = array<i64: 640, 128>}, {transform_indices = @transform_2, window_bounds = array<i64: 1, 128>}, {transform_indices = @transform_3, window_bounds = array<i64: 16, 128>}]} {
    %c0_i32 = arith.constant 0 : i32
    %0 = arith.cmpi eq, %arg2, %c0_i32 : i32
    %1 = arith.extui %0 : i1 to i32
    %c0_i32_0 = arith.constant 0 : i32
    %2 = arith.cmpi ne, %1, %c0_i32_0 : i32
    scf.if %2 {
      %cst_10 = arith.constant 0.000000e+00 : f32
      %12 = vector.broadcast %cst_10 : f32 to vector<16x128xf32>
      %c0_11 = arith.constant 0 : index
      %c0_12 = arith.constant 0 : index
      %13 = vector.load %arg7[%c0_11, %c0_12] : memref<16x128xf32, #tpu.memory_space<vmem>>, vector<16x128xf32>
      tpu.vector_store %arg7[%c0_11, %c0_12], %12 {strides = array<i32>} : memref<16x128xf32, #tpu.memory_space<vmem>>, vector<16x128xf32>,
    } else {
    }
    %c0 = arith.constant 0 : index
    %c0_1 = arith.constant 0 : index
    %3 = vector.load %arg7[%c0, %c0_1] : memref<16x128xf32, #tpu.memory_space<vmem>>, vector<16x128xf32>
    %c0_2 = arith.constant 0 : index
    %c0_3 = arith.constant 0 : index
    %4 = vector.load %arg3[%c0_2, %c0_3] : memref<16x640xbf16, #tpu.memory_space<vmem>>, vector<16x640xbf16>
    %c0_4 = arith.constant 0 : index
    %c0_5 = arith.constant 0 : index
    %5 = vector.load %arg4[%c0_4, %c0_5] : memref<640x128xbf16, #tpu.memory_space<vmem>>, vector<640x128xbf16>
    %cst = arith.constant dense<0.000000e+00> : vector<16x128xf32>
    %6 = tpu.matmul %4, %5, %cst {dimension_numbers = #tpu.dot_dimension_numbers<[1], [0], [0], [1], [0, 0, 1, 1], [], []>} : vector<16x640xbf16>, vector<640x128xbf16>, vector<16x128xf32> -> vector<16x128xf32>
    %7 = arith.addf %3, %6 : vector<16x128xf32>
    %c0_6 = arith.constant 0 : index
    %c0_7 = arith.constant 0 : index
    %8 = vector.load %arg7[%c0_6, %c0_7] : memref<16x128xf32, #tpu.memory_space<vmem>>, vector<16x128xf32>
    tpu.vector_store %arg7[%c0_6, %c0_7], %7 {strides = array<i32>} : memref<16x128xf32, #tpu.memory_space<vmem>>, vector<16x128xf32>,
    %c0_i32_8 = arith.constant 0 : i32
    %9 = arith.cmpi eq, %arg2, %c0_i32_8 : i32
    %10 = arith.extui %9 : i1 to i32
    %c0_i32_9 = arith.constant 0 : i32
    %11 = arith.cmpi ne, %10, %c0_i32_9 : i32
    scf.if %11 {
      %c0_10 = arith.constant 0 : index
      %c0_11 = arith.constant 0 : index
      %12 = vector.load %arg7[%c0_10, %c0_11] : memref<16x128xf32, #tpu.memory_space<vmem>>, vector<16x128xf32>
      %c0_12 = arith.constant 0 : index
      %c0_13 = arith.constant 0 : index
      %13 = vector.load %arg5[%c0_12, %c0_13] : memref<1x128xf32, #tpu.memory_space<vmem>>, vector<1x128xf32>
      %14 = vector.broadcast %13 : vector<1x128xf32> to vector<16x128xf32>
      %15 = arith.addf %12, %14 : vector<16x128xf32>
      %c0_14 = arith.constant 0 : index
      %c0_15 = arith.constant 0 : index
      %16 = vector.load %arg6[%c0_14, %c0_15] : memref<16x128xf32, #tpu.memory_space<vmem>>, vector<16x128xf32>
      tpu.vector_store %arg6[%c0_14, %c0_15], %15 {strides = array<i32>} : memref<16x128xf32, #tpu.memory_space<vmem>>, vector<16x128xf32>,
    } else {
    }
    return
  }
  func.func @transform_0(%arg0: i32, %arg1: i32, %arg2: i32) -> (i32, i32) {
    %c0_i32 = arith.constant 0 : i32
    return %arg0, %arg2 : i32, i32
  }
  func.func @transform_1(%arg0: i32, %arg1: i32, %arg2: i32) -> (i32, i32) {
    %c0_i32 = arith.constant 0 : i32
    return %arg2, %arg1 : i32, i32
  }
  func.func @transform_2(%arg0: i32, %arg1: i32, %arg2: i32) -> (i32, i32) {
    %c0_i32 = arith.constant 0 : i32
    %c0_i32_0 = arith.constant 0 : i32
    return %c0_i32, %arg1 : i32, i32
  }
  func.func @transform_3(%arg0: i32, %arg1: i32, %arg2: i32) -> (i32, i32) {
    %c0_i32 = arith.constant 0 : i32
    return %arg0, %arg1 : i32, i32
  }
}

</mosaic_0001>

<llo_original>
// kernel: _dynamic_linear_fwd.1
$region0: #{_dynamic_linear_fwd.1}
  #allocation0 [shape = 'u32[]', space=smem, size = 0x4, offset = 0x4, fixed_abs, tag = 'smem constant byte address 0x4 - core index']
  #allocation1 [shape = 'u32[144,128]{1,0:T(1,128)}', space=vmem, size = 0x12000, scoped, tag = 'internal scratch']
  #allocation2 [shape = 'f32[16,128]{1,0:T(8,128)}', space=vmem, size = 0x2000, scoped, tag = 'scratch operand']
  %s0 = inlined_call_operand.vmem [shape: bf16[16,640], index: 0, kind: input, shape index: {}]
  %s1 = inlined_call_operand.hbm [shape: bf16[768,384], index: 1, kind: input, shape index: {}]
  %s2 = inlined_call_operand.vmem [shape: f32[1,384], index: 2, kind: input, shape index: {}]
  %s3 = inlined_call_operand.hbm [shape: f32[16,384], index: 3, kind: output, shape index: {}]
  %s4 = sld [smem:[#allocation0]]
  $region57: #{_dynamic_linear_fwd.1} parent=0
    _
  %s6 = ssub.s32 1, %s4
  %s7 = scalar_select 0, %s6, %s4
  $region1: #{_dynamic_linear_fwd.1} parent=0
    #allocation3 [shape = 'u8[327680]{0}', space=vmem, size = 0x50000, scoped, tag = 'input window, operand 1']
    #allocation4 [shape = 's32[2]{0}', space=sflag, size = 0x8, scoped, tag = 'scoped memory for _dynamic_linear_fwd.1']
    #allocation5 [shape = 's32[2]{0}', space=sflag, size = 0x8, scoped, tag = 'scoped memory for _dynamic_linear_fwd.1']
    #allocation6 [shape = 'u8[16384]{0}', space=vmem, size = 0x4000, scoped, tag = 'output window, operand 0']
    %8 = vsyncpa [#allocation4], 0
    %s9 = scalar_lea.sflag [#allocation4], 1
    %10 = vsyncpa %s9, 0
    %11 = vsyncpa [#allocation5], 0
    %s12 = scalar_lea.sflag [#allocation5], 1
    %13 = vsyncpa %s12, 0
    loop: start=0, step=1, limit=5
    $region2: #{_dynamic_linear_fwd.1} parent=1 // loop_pre_header
      _
    $region3: #{_dynamic_linear_fwd.1} parent=1 // loop_header
      %s15 = sphi 0, %s19
      %p16 = scmp.ge.s32.totalorder %s15, 5
      %s22 = sphi 0, %s41
      %s23 = sphi 0, %s37
      %s24 = sphi 0, %s33
      %s25 = sphi 0, %s22
      %s26 = sphi 0, %s23
      %s27 = sphi 0, %s24
      %s28 = sphi 0, %s25
      %s29 = sphi 0, %s26
      %s30 = sphi 0, %s27
      %s46 = sphi 0, %s48
      %s49 = sphi 0, %s46
      %s50 = sphi 0, %s49
      %s66 = sphi 0, %s50
      %s74 = sphi 0, %s76
      %s77 = sphi 0, %s74
      %s78 = sphi 0, %s77
      %s94 = sphi 0, %s78
      %s100 = sphi 0, %s102
      %s103 = sphi 0, %s100
      %s104 = sphi 0, %s103
      %s120 = sphi 0, %s104
      %s128 = sphi 0, %s130
      %s131 = sphi 0, %s128
      %s132 = sphi 0, %s131
      %s148 = sphi 0, %s132
    $region4: #{_dynamic_linear_fwd.1} parent=1 // loop_header_branch
      %18 = sbr.rel (%p16) target = $region8
    $region5: #{_dynamic_linear_fwd.1} parent=1 // loop_body
      %s20 = ssub.s32 %s15, 1
      %s21 = ssub.s32 %s15, 2
      %s31 = sadd.s32 1, %s24
      %p32 = scmp.ge.s32.totalorder %s31, 1
      %s33 = scalar_select %p32, 0, %s31
      %s34 = sadd.s32 1, %s23
      %s35 = scalar_select %p32, %s34, %s23
      %p36 = scmp.ge.s32.totalorder %s35, 3
      %s37 = scalar_select %p36, 0, %s35
      %s38 = sadd.s32 1, %s22
      %s39 = scalar_select %p36, %s38, %s22
      %p40 = scmp.ge.s32.totalorder %s39, 1
      %s41 = scalar_select %p40, 0, %s39
      %s42 = ssub.s32 %s22, %s41
      %s43 = ssub.s32 %s24, %s33
      %s44 = sor.u32 %s42, %s43
      %p45 = scmp.eq.s32.totalorder %s44, 0
      %s47 = sadd.s32 %s46, 1
      %s48 = scalar_select %p45, %s46, %s47
      %p51 = pneg %p45
      %p52 = scmp.eq.s32.totalorder %s15, 2
      %p53 = por %p51, %p52
      %p54 = scmp.ne.s32.totalorder %s46, %s49
      %p55 = scmp.eq.s32.totalorder %s15, 0
      %p56 = por %p54, %p55
      %p57 = scmp.ne.s32.totalorder %s46, %s49
      %p58 = scmp.eq.s32.totalorder %s20, 2
      %p59 = por %p57, %p58
      %p60 = scmp.ne.s32.totalorder %s49, %s50
      %p61 = scmp.eq.s32.totalorder %s20, 0
      %p62 = por %p60, %p61
      %p63 = scmp.ne.s32.totalorder %s49, %s50
      %p64 = scmp.eq.s32.totalorder %s21, 2
      %p65 = por %p63, %p64
      %p67 = scmp.ne.s32.totalorder %s50, %s66
      %p68 = scmp.eq.s32.totalorder %s21, 0
      %p69 = por %p67, %p68
      %s70 = ssub.s32 %s24, %s33
      %s71 = ssub.s32 %s23, %s37
      %s72 = sor.u32 %s70, %s71
      %p73 = scmp.eq.s32.totalorder %s72, 0
      %s75 = sadd.s32 %s74, 1
      %s76 = scalar_select %p73, %s74, %s75
      %p79 = pneg %p73
      %p80 = scmp.eq.s32.totalorder %s15, 2
      %p81 = por %p79, %p80
      %p82 = scmp.ne.s32.totalorder %s74, %s77
      %p83 = scmp.eq.s32.totalorder %s15, 0
      %p84 = por %p82, %p83
      %p85 = scmp.ne.s32.totalorder %s74, %s77
      %p86 = scmp.eq.s32.totalorder %s20, 2
      %p87 = por %p85, %p86
      %p88 = scmp.ne.s32.totalorder %s77, %s78
      %p89 = scmp.eq.s32.totalorder %s20, 0
      %p90 = por %p88, %p89
      %p91 = scmp.ne.s32.totalorder %s77, %s78
      %p92 = scmp.eq.s32.totalorder %s21, 2
      %p93 = por %p91, %p92
      %p95 = scmp.ne.s32.totalorder %s78, %s94
      %p96 = scmp.eq.s32.totalorder %s21, 0
      %p97 = por %p95, %p96
      %s98 = ssub.s32 %s23, %s37
      %p99 = scmp.eq.s32.totalorder %s98, 0
      %s101 = sadd.s32 %s100, 1
      %s102 = scalar_select %p99, %s100, %s101
      %p105 = pneg %p99
      %p106 = scmp.eq.s32.totalorder %s15, 2
      %p107 = por %p105, %p106
      %p108 = scmp.ne.s32.totalorder %s100, %s103
      %p109 = scmp.eq.s32.totalorder %s15, 0
      %p110 = por %p108, %p109
      %p111 = scmp.ne.s32.totalorder %s100, %s103
      %p112 = scmp.eq.s32.totalorder %s20, 2
      %p113 = por %p111, %p112
      %p114 = scmp.ne.s32.totalorder %s103, %s104
      %p115 = scmp.eq.s32.totalorder %s20, 0
      %p116 = por %p114, %p115
      %p117 = scmp.ne.s32.totalorder %s103, %s104
      %p118 = scmp.eq.s32.totalorder %s21, 2
      %p119 = por %p117, %p118
      %p121 = scmp.ne.s32.totalorder %s104, %s120
      %p122 = scmp.eq.s32.totalorder %s21, 0
      %p123 = por %p121, %p122
      %s124 = ssub.s32 %s22, %s41
      %s125 = ssub.s32 %s23, %s37
      %s126 = sor.u32 %s124, %s125
      %p127 = scmp.eq.s32.totalorder %s126, 0
      %s129 = sadd.s32 %s128, 1
      %s130 = scalar_select %p127, %s128, %s129
      %p133 = pneg %p127
      %p134 = scmp.eq.s32.totalorder %s15, 2
      %p135 = por %p133, %p134
      %p136 = scmp.ne.s32.totalorder %s128, %s131
      %p137 = scmp.eq.s32.totalorder %s15, 0
      %p138 = por %p136, %p137
      %p139 = scmp.ne.s32.totalorder %s128, %s131
      %p140 = scmp.eq.s32.totalorder %s20, 2
      %p141 = por %p139, %p140
      %p142 = scmp.ne.s32.totalorder %s131, %s132
      %p143 = scmp.eq.s32.totalorder %s20, 0
      %p144 = por %p142, %p143
      %p145 = scmp.ne.s32.totalorder %s131, %s132
      %p146 = scmp.eq.s32.totalorder %s21, 2
      %p147 = por %p145, %p146
      %p149 = scmp.ne.s32.totalorder %s132, %s148
      %p150 = scmp.eq.s32.totalorder %s21, 0
      %p151 = por %p149, %p150
      %p152 = scmp.le.s32.totalorder 1, %s15
      %p153 = scmp.lt.s32.totalorder %s15, 4
      %p154 = pnand %p152, %p153
      %p155 = pneg %p154
      // Predicated region
      $region9: #{_dynamic_linear_fwd.1} parent=5 // pred_check
        _
      $region10: #{_dynamic_linear_fwd.1} parent=5 // pred_check_branch
        %157 = sbr.rel (%p154) target = $region12
      $region11: #{_dynamic_linear_fwd.1} parent=5 // pred_region
        %s158 = ssub.s32 %s15, 1
        // Predicated region
        $region13: #{_dynamic_linear_fwd.1} parent=11 // pred_check
          %p159 = pneg %p62
        $region14: #{_dynamic_linear_fwd.1} parent=11 // pred_check_branch
          %161 = sbr.rel (%p159) target = $region16
        $region15: #{_dynamic_linear_fwd.1} parent=11 // pred_region
          %s162 = smul.u32 2, %s25
          %s163 = smul.u32 5, %s27
          %p164 = scmp.lt.s32.totalorder %s162, 1
          %s165 = scalar_select %p164, %s162, 1
          %p166 = scmp.lt.s32.totalorder %s163, 4
          %s167 = scalar_select %p166, %s163, 4
          %s168 = smul.addr %s165, 5
          %s169 = sadd.s32 %s167, %s168
          %s170 = smul.addr %s169, 4
          %s171 = scalar_lea.vmem %s0, %s170
          %s172 = smul.u32 2, %s25
          %s173 = smul.u32 5, %s27
        $region16: #{_dynamic_linear_fwd.1} parent=11 // pred_fallthru
          _
      $region12: #{_dynamic_linear_fwd.1} parent=5 // pred_fallthru
        _
      %p174 = scmp.lt.s32.totalorder %s15, 3
      // Predicated region
      $region17: #{_dynamic_linear_fwd.1} parent=5 // pred_check
        %p175 = pneg %p174
      $region18: #{_dynamic_linear_fwd.1} parent=5 // pred_check_branch
        %177 = sbr.rel (%p175) target = $region20
      $region19: #{_dynamic_linear_fwd.1} parent=5 // pred_region
        // Predicated region
        $region21: #{_dynamic_linear_fwd.1} parent=19 // pred_check
          %p178 = pneg %p84
        $region22: #{_dynamic_linear_fwd.1} parent=19 // pred_check_branch
          %180 = sbr.rel (%p178) target = $region24
        $region23: #{_dynamic_linear_fwd.1} parent=19 // pred_region
          %s181 = sand.u32 %s74, 1
          %s182 = scalar_lea.sflag [#allocation4], %s181
          %s183 = sand.u32 %s74, 1
          %s184 = smul.addr %s183, 320
          %s185 = scalar_lea.vmem [#allocation3], %s184
          %s186 = smul.u32 80, %s24
          %s187 = ssub.s32 96, %s186
          %p188 = scmp.lt.s32.totalorder %s187, 80
          %s189 = scalar_select %p188, %s187, 80
          %s190 = smul.u32 64, %s189
          %s192 = ssub.s32 5120, %s190
          %193 = vsyncadd %s182, %s192
          %p194 = scmp.ne.s32.totalorder 0, %s190
          %s195 = smul.addr %s186, 3
          %s196 = sadd.s32 %s23, %s195
          %s197 = smul.addr %s196, 64
          %s198 = scalar_lea.hbm %s1, %s197
          %s199 = smul.u32 4, %s189
          %s200 = sshll.u32 %s185, 4
          %s201 = int_to_ptr.vmem [resolvable:$true] %s200
          %s202 = sshll.u32 %s199, 4
          %206 = dma.hbm_to_vmem [thread:$0]  (%p194), %s198, %s202, %s201, %s182, 192, 64, 4
        $region24: #{_dynamic_linear_fwd.1} parent=19 // pred_fallthru
          _
        // Predicated region
        $region25: #{_dynamic_linear_fwd.1} parent=19 // pred_check
          %p207 = pneg %p110
        $region26: #{_dynamic_linear_fwd.1} parent=19 // pred_check_branch
          %209 = sbr.rel (%p207) target = $region28
        $region27: #{_dynamic_linear_fwd.1} parent=19 // pred_region
          %p210 = scmp.lt.s32.totalorder %s23, 2
          %s211 = scalar_select %p210, %s23, 2
          %s212 = scalar_lea.vmem %s2, %s211
        $region28: #{_dynamic_linear_fwd.1} parent=19 // pred_fallthru
          _
      $region20: #{_dynamic_linear_fwd.1} parent=5 // pred_fallthru
        _
      %p213 = scmp.le.s32.totalorder 1, %s15
      %p214 = scmp.lt.s32.totalorder %s15, 4
      %p215 = pnand %p213, %p214
      %p216 = pneg %p215
      // Predicated region
      $region29: #{_dynamic_linear_fwd.1} parent=5 // pred_check
        _
      $region30: #{_dynamic_linear_fwd.1} parent=5 // pred_check_branch
        %218 = sbr.rel (%p215) target = $region32
      $region31: #{_dynamic_linear_fwd.1} parent=5 // pred_region
        %s219 = ssub.s32 %s15, 1
        %s220 = sand.u32 %s77, 1
        %s221 = scalar_lea.sflag [#allocation4], %s220
        %s222 = sand.u32 %s77, 1
        %s223 = smul.addr %s222, 320
        %s224 = scalar_lea.vmem [#allocation3], %s223
        // Predicated region
        $region33: #{_dynamic_linear_fwd.1} parent=31 // pred_check
          %p225 = pneg %p90
        $region34: #{_dynamic_linear_fwd.1} parent=31 // pred_check_branch
          %227 = sbr.rel (%p225) target = $region36
        $region35: #{_dynamic_linear_fwd.1} parent=31 // pred_region
          %228 = dma.done %s221, 5120
        $region36: #{_dynamic_linear_fwd.1} parent=31 // pred_fallthru
          _
        %s229 = smul.u32 2, %s25
        %s230 = smul.u32 5, %s27
        %p231 = scmp.lt.s32.totalorder %s229, 1
        %s232 = scalar_select %p231, %s229, 1
        %p233 = scmp.lt.s32.totalorder %s230, 4
        %s234 = scalar_select %p233, %s230, 4
        %s235 = smul.addr %s232, 5
        %s236 = sadd.s32 %s234, %s235
        %s237 = smul.addr %s236, 4
        %s238 = scalar_lea.vmem %s0, %s237
        %p239 = pneg %p62
        %p240 = pneg %p59
        %s241 = sand.u32 %s77, 1
        %s242 = scalar_lea.sflag [#allocation4], %s241
        %s243 = sand.u32 %s77, 1
        %s244 = smul.addr %s243, 320
        %s245 = scalar_lea.vmem [#allocation3], %s244
        %p246 = pneg %p90
        %p247 = pneg %p87
        %p248 = scmp.lt.s32.totalorder %s26, 2
        %s249 = scalar_select %p248, %s26, 2
        %s250 = scalar_lea.vmem %s2, %s249
        %p251 = pneg %p116
        %p252 = pneg %p113
        %p253 = pneg %p144
        %p254 = pneg %p141
        %s255 = sand.u32 %s131, 1
        %s256 = scalar_lea.sflag [#allocation5], %s255
        %s257 = sand.u32 %s131, 1
        %s258 = smul.addr %s257, 16
        %s259 = scalar_lea.vmem [#allocation6], %s258
        %s260 = smul.u32 2, %s25
        %s261 = smul.u32 5, %s27
        %p262 = scmp.lt.s32.totalorder %s260, 1
        %s263 = scalar_select %p262, %s260, 1
        %p264 = scmp.lt.s32.totalorder %s261, 4
        %s265 = scalar_select %p264, %s261, 4
        %s266 = smul.addr %s263, 5
        %s267 = sadd.s32 %s265, %s266
        %s268 = smul.addr %s267, 4
        %s269 = scalar_lea.vmem %s0, %s268
        %s270 = smul.u32 2, %s25
        %s271 = smul.u32 5, %s27
        %s272 = smul.u32 80, %s27
        %s273 = ssub.s32 96, %s272
        %p274 = scmp.lt.s32.totalorder %s273, 80
        %s275 = scalar_select %p274, %s273, 80
        %s276 = smul.u32 64, %s275
        %p277 = scmp.lt.s32.totalorder %s26, 2
        %s278 = scalar_select %p277, %s26, 2
        %s279 = scalar_lea.vmem %s2, %s278
        %s280 = smul.u32 2, %s25
        %p282 = scmp.eq.s32.totalorder %s27, 0
        // Predicated region
        $region37: #{_dynamic_linear_fwd.1} parent=31 // pred_check
          %p283 = pneg %p282
        $region38: #{_dynamic_linear_fwd.1} parent=31 // pred_check_branch
          %285 = sbr.rel (%p283) target = $region40
        $region39: #{_dynamic_linear_fwd.1} parent=31 // pred_region
          %286 = vst [vmem:[#allocation2] sm:$0xff] 0.0
          %287 = vst [vmem:[#allocation2 + $0x8] sm:$0xff] 0.0
        $region40: #{_dynamic_linear_fwd.1} parent=31 // pred_fallthru
          _
        %v288 = vld [vmem:[#allocation2] sm:$0xff]
        %v289 = vld [vmem:[#allocation2 + $0x8] sm:$0xff]
        %v290 = vld [vmem:[%s269] sm:$0xff]
        %v291 = vld [vmem:[%s269 + $0x8] sm:$0xff]
        %v292 = vld [vmem:[%s269 + $0x10] sm:$0xf]
        %v293 = vld [vmem:[%s269 + $0x14] sm:$0xff]
        %v294 = vld [vmem:[%s269 + $0x1c] sm:$0xff]
        %v295 = vld [vmem:[%s269 + $0x24] sm:$0xf]
        %v296 = vld [vmem:[%s224] sm:$0xf]
        %v297 = vld [vmem:[%s224 + $0x4] sm:$0xf]
        %v298 = vld [vmem:[%s224 + $0x8] sm:$0xf]
        %v299 = vld [vmem:[%s224 + $0xc] sm:$0xf]
        %v300 = vld [vmem:[%s224 + $0x10] sm:$0xf]
        %v301 = vld [vmem:[%s224 + $0x14] sm:$0xf]
        %v302 = vld [vmem:[%s224 + $0x18] sm:$0xf]
        %v303 = vld [vmem:[%s224 + $0x1c] sm:$0xf]
        %v304 = vld [vmem:[%s224 + $0x20] sm:$0xf]
        %v305 = vld [vmem:[%s224 + $0x24] sm:$0xf]
        %v306 = vld [vmem:[%s224 + $0x28] sm:$0xf]
        %v307 = vld [vmem:[%s224 + $0x2c] sm:$0xf]
        %v308 = vld [vmem:[%s224 + $0x30] sm:$0xf]
        %v309 = vld [vmem:[%s224 + $0x34] sm:$0xf]
        %v310 = vld [vmem:[%s224 + $0x38] sm:$0xf]
        %v311 = vld [vmem:[%s224 + $0x3c] sm:$0xf]
        %v312 = vld [vmem:[%s224 + $0x40] sm:$0xf]
        %v313 = vld [vmem:[%s224 + $0x44] sm:$0xf]
        %v314 = vld [vmem:[%s224 + $0x48] sm:$0xf]
        %v315 = vld [vmem:[%s224 + $0x4c] sm:$0xf]
        %v316 = vld [vmem:[%s224 + $0x50] sm:$0xf]
        %v317 = vld [vmem:[%s224 + $0x54] sm:$0xf]
        %v318 = vld [vmem:[%s224 + $0x58] sm:$0xf]
        %v319 = vld [vmem:[%s224 + $0x5c] sm:$0xf]
        %v320 = vld [vmem:[%s224 + $0x60] sm:$0xf]
        %v321 = vld [vmem:[%s224 + $0x64] sm:$0xf]
        %v322 = vld [vmem:[%s224 + $0x68] sm:$0xf]
        %v323 = vld [vmem:[%s224 + $0x6c] sm:$0xf]
        %v324 = vld [vmem:[%s224 + $0x70] sm:$0xf]
        %v325 = vld [vmem:[%s224 + $0x74] sm:$0xf]
        %v326 = vld [vmem:[%s224 + $0x78] sm:$0xf]
        %v327 = vld [vmem:[%s224 + $0x7c] sm:$0xf]
        %v328 = vld [vmem:[%s224 + $0x80] sm:$0xf]
        %v329 = vld [vmem:[%s224 + $0x84] sm:$0xf]
        %v330 = vld [vmem:[%s224 + $0x88] sm:$0xf]
        %v331 = vld [vmem:[%s224 + $0x8c] sm:$0xf]
        %v332 = vld [vmem:[%s224 + $0x90] sm:$0xf]
        %v333 = vld [vmem:[%s224 + $0x94] sm:$0xf]
        %v334 = vld [vmem:[%s224 + $0x98] sm:$0xf]
        %v335 = vld [vmem:[%s224 + $0x9c] sm:$0xf]
        %v336 = vld [vmem:[%s224 + $0xa0] sm:$0xf]
        %v337 = vld [vmem:[%s224 + $0xa4] sm:$0xf]
        %v338 = vld [vmem:[%s224 + $0xa8] sm:$0xf]
        %v339 = vld [vmem:[%s224 + $0xac] sm:$0xf]
        %v340 = vld [vmem:[%s224 + $0xb0] sm:$0xf]
        %v341 = vld [vmem:[%s224 + $0xb4] sm:$0xf]
        %v342 = vld [vmem:[%s224 + $0xb8] sm:$0xf]
        %v343 = vld [vmem:[%s224 + $0xbc] sm:$0xf]
        %v344 = vld [vmem:[%s224 + $0xc0] sm:$0xf]
        %v345 = vld [vmem:[%s224 + $0xc4] sm:$0xf]
        %v346 = vld [vmem:[%s224 + $0xc8] sm:$0xf]
        %v347 = vld [vmem:[%s224 + $0xcc] sm:$0xf]
        %v348 = vld [vmem:[%s224 + $0xd0] sm:$0xf]
        %v349 = vld [vmem:[%s224 + $0xd4] sm:$0xf]
        %v350 = vld [vmem:[%s224 + $0xd8] sm:$0xf]
        %v351 = vld [vmem:[%s224 + $0xdc] sm:$0xf]
        %v352 = vld [vmem:[%s224 + $0xe0] sm:$0xf]
        %v353 = vld [vmem:[%s224 + $0xe4] sm:$0xf]
        %v354 = vld [vmem:[%s224 + $0xe8] sm:$0xf]
        %v355 = vld [vmem:[%s224 + $0xec] sm:$0xf]
        %v356 = vld [vmem:[%s224 + $0xf0] sm:$0xf]
        %v357 = vld [vmem:[%s224 + $0xf4] sm:$0xf]
        %v358 = vld [vmem:[%s224 + $0xf8] sm:$0xf]
        %v359 = vld [vmem:[%s224 + $0xfc] sm:$0xf]
        %v360 = vld [vmem:[%s224 + $0x100] sm:$0xf]
        %v361 = vld [vmem:[%s224 + $0x104] sm:$0xf]
        %v362 = vld [vmem:[%s224 + $0x108] sm:$0xf]
        %v363 = vld [vmem:[%s224 + $0x10c] sm:$0xf]
        %v364 = vld [vmem:[%s224 + $0x110] sm:$0xf]
        %v365 = vld [vmem:[%s224 + $0x114] sm:$0xf]
        %v366 = vld [vmem:[%s224 + $0x118] sm:$0xf]
        %v367 = vld [vmem:[%s224 + $0x11c] sm:$0xf]
        %v368 = vld [vmem:[%s224 + $0x120] sm:$0xf]
        %v369 = vld [vmem:[%s224 + $0x124] sm:$0xf]
        %v370 = vld [vmem:[%s224 + $0x128] sm:$0xf]
        %v371 = vld [vmem:[%s224 + $0x12c] sm:$0xf]
        %v372 = vld [vmem:[%s224 + $0x130] sm:$0xf]
        %v373 = vld [vmem:[%s224 + $0x134] sm:$0xf]
        %v374 = vld [vmem:[%s224 + $0x138] sm:$0xf]
        %v375 = vld [vmem:[%s224 + $0x13c] sm:$0xf]
        %v382 = vunpack.c.l.b16 %v290
        %v383 = vunpack.c.h.b16 %v290
        %v384 = vunpack.c.l.b16 %v291
        %v385 = vunpack.c.h.b16 %v291
        %v386 = vunpack.c.l.b16 %v292
        %v387 = vunpack.c.l.b16 %v293
        %v388 = vunpack.c.h.b16 %v293
        %v389 = vunpack.c.l.b16 %v294
        %v390 = vunpack.c.h.b16 %v294
        %v391 = vunpack.c.l.b16 %v295
        %v392 = vpack.c.b16 %v387, %v382
        %v393 = vpack.c.b16 %v388, %v383
        %v394 = vpack.c.b16 %v389, %v384
        %v395 = vpack.c.b16 %v390, %v385
        %v396 = vpack.c.b16 %v391, %v386
        %v482 = vunpack.c.l.b16 %v296
        %v483 = vunpack.c.l.b16 %v297
        %v484 = vunpack.c.l.b16 %v298
        %v485 = vunpack.c.l.b16 %v299
        %v486 = vunpack.c.l.b16 %v300
        %v487 = vunpack.c.l.b16 %v301
        %v488 = vunpack.c.l.b16 %v302
        %v489 = vunpack.c.l.b16 %v303
        %v490 = vunpack.c.l.b16 %v304
        %v491 = vunpack.c.l.b16 %v305
        %v492 = vunpack.c.l.b16 %v306
        %v493 = vunpack.c.l.b16 %v307
        %v494 = vunpack.c.l.b16 %v308
        %v495 = vunpack.c.l.b16 %v309
        %v496 = vunpack.c.l.b16 %v310
        %v497 = vunpack.c.l.b16 %v311
        %v498 = vunpack.c.l.b16 %v312
        %v499 = vunpack.c.l.b16 %v313
        %v500 = vunpack.c.l.b16 %v314
        %v501 = vunpack.c.l.b16 %v315
        %v502 = vunpack.c.l.b16 %v316
        %v503 = vunpack.c.l.b16 %v317
        %v504 = vunpack.c.l.b16 %v318
        %v505 = vunpack.c.l.b16 %v319
        %v506 = vunpack.c.l.b16 %v320
        %v507 = vunpack.c.l.b16 %v321
        %v508 = vunpack.c.l.b16 %v322
        %v509 = vunpack.c.l.b16 %v323
        %v510 = vunpack.c.l.b16 %v324
        %v511 = vunpack.c.l.b16 %v325
        %v512 = vunpack.c.l.b16 %v326
        %v513 = vunpack.c.l.b16 %v327
        %v514 = vunpack.c.l.b16 %v328
        %v515 = vunpack.c.l.b16 %v329
        %v516 = vunpack.c.l.b16 %v330
        %v517 = vunpack.c.l.b16 %v331
        %v518 = vunpack.c.l.b16 %v332
        %v519 = vunpack.c.l.b16 %v333
        %v520 = vunpack.c.l.b16 %v334
        %v521 = vunpack.c.l.b16 %v335
        %v522 = vunpack.c.l.b16 %v336
        %v523 = vunpack.c.l.b16 %v337
        %v524 = vunpack.c.l.b16 %v338
        %v525 = vunpack.c.l.b16 %v339
        %v526 = vunpack.c.l.b16 %v340
        %v527 = vunpack.c.l.b16 %v341
        %v528 = vunpack.c.l.b16 %v342
        %v529 = vunpack.c.l.b16 %v343
        %v530 = vunpack.c.l.b16 %v344
        %v531 = vunpack.c.l.b16 %v345
        %v532 = vunpack.c.l.b16 %v346
        %v533 = vunpack.c.l.b16 %v347
        %v534 = vunpack.c.l.b16 %v348
        %v535 = vunpack.c.l.b16 %v349
        %v536 = vunpack.c.l.b16 %v350
        %v537 = vunpack.c.l.b16 %v351
        %v538 = vunpack.c.l.b16 %v352
        %v539 = vunpack.c.l.b16 %v353
        %v540 = vunpack.c.l.b16 %v354
        %v541 = vunpack.c.l.b16 %v355
        %v542 = vunpack.c.l.b16 %v356
        %v543 = vunpack.c.l.b16 %v357
        %v544 = vunpack.c.l.b16 %v358
        %v545 = vunpack.c.l.b16 %v359
        %v546 = vunpack.c.l.b16 %v360
        %v547 = vunpack.c.l.b16 %v361
        %v548 = vunpack.c.l.b16 %v362
        %v549 = vunpack.c.l.b16 %v363
        %v550 = vunpack.c.l.b16 %v364
        %v551 = vunpack.c.l.b16 %v365
        %v552 = vunpack.c.l.b16 %v366
        %v553 = vunpack.c.l.b16 %v367
        %v554 = vunpack.c.l.b16 %v368
        %v555 = vunpack.c.l.b16 %v369
        %v556 = vunpack.c.l.b16 %v370
        %v557 = vunpack.c.l.b16 %v371
        %v558 = vunpack.c.l.b16 %v372
        %v559 = vunpack.c.l.b16 %v373
        %v560 = vunpack.c.l.b16 %v374
        %v561 = vunpack.c.l.b16 %v375
        %v562 = vpack.c.b16 %v483, %v482
        %v563 = vpack.c.b16 %v485, %v484
        %v564 = vpack.c.b16 %v487, %v486
        %v565 = vpack.c.b16 %v489, %v488
        %v566 = vpack.c.b16 %v491, %v490
        %v567 = vpack.c.b16 %v493, %v492
        %v568 = vpack.c.b16 %v495, %v494
        %v569 = vpack.c.b16 %v497, %v496
        %v570 = vpack.c.b16 %v499, %v498
        %v571 = vpack.c.b16 %v501, %v500
        %v572 = vpack.c.b16 %v503, %v502
        %v573 = vpack.c.b16 %v505, %v504
        %v574 = vpack.c.b16 %v507, %v506
        %v575 = vpack.c.b16 %v509, %v508
        %v576 = vpack.c.b16 %v511, %v510
        %v577 = vpack.c.b16 %v513, %v512
        %v578 = vpack.c.b16 %v515, %v514
        %v579 = vpack.c.b16 %v517, %v516
        %v580 = vpack.c.b16 %v519, %v518
        %v581 = vpack.c.b16 %v521, %v520
        %v582 = vpack.c.b16 %v523, %v522
        %v583 = vpack.c.b16 %v525, %v524
        %v584 = vpack.c.b16 %v527, %v526
        %v585 = vpack.c.b16 %v529, %v528
        %v586 = vpack.c.b16 %v531, %v530
        %v587 = vpack.c.b16 %v533, %v532
        %v588 = vpack.c.b16 %v535, %v534
        %v589 = vpack.c.b16 %v537, %v536
        %v590 = vpack.c.b16 %v539, %v538
        %v591 = vpack.c.b16 %v541, %v540
        %v592 = vpack.c.b16 %v543, %v542
        %v593 = vpack.c.b16 %v545, %v544
        %v594 = vpack.c.b16 %v547, %v546
        %v595 = vpack.c.b16 %v549, %v548
        %v596 = vpack.c.b16 %v551, %v550
        %v597 = vpack.c.b16 %v553, %v552
        %v598 = vpack.c.b16 %v555, %v554
        %v599 = vpack.c.b16 %v557, %v556
        %v600 = vpack.c.b16 %v559, %v558
        %v601 = vpack.c.b16 %v561, %v560
        %642 = vmatprep.subr.bf16.mxu0 0
        %643 = vmatpush1.bf16.msra.mxu0 %v569
        %644 = vmatprep.subr.bf16.mxu0 0
        %645 = vmatpush1.bf16.msra.mxu0 %v568
        %646 = vmatprep.subr.bf16.mxu0 0
        %647 = vmatpush1.bf16.msra.mxu0 %v567
        %648 = vmatprep.subr.bf16.mxu0 0
        %649 = vmatpush1.bf16.msra.mxu0 %v566
        %650 = vmatprep.subr.bf16.mxu0 0
        %651 = vmatpush1.bf16.msra.mxu0 %v565
        %652 = vmatprep.subr.bf16.mxu0 0
        %653 = vmatpush1.bf16.msra.mxu0 %v564
        %654 = vmatprep.subr.bf16.mxu0 0
        %655 = vmatpush1.bf16.msra.mxu0 %v563
        %656 = vmatprep.subr.bf16.mxu0 0
        %657 = vmatpush1.bf16.msra.mxu0 %v562
        %658 = vmatprep.subr.bf16.mxu0 0
        %659 = vmatpush2.bf16.msra.mxu0 %v577
        %660 = vmatprep.subr.bf16.mxu0 0
        %661 = vmatpush2.bf16.msra.mxu0 %v576
        %662 = vmatprep.subr.bf16.mxu0 0
        %663 = vmatpush2.bf16.msra.mxu0 %v575
        %664 = vmatprep.subr.bf16.mxu0 0
        %665 = vmatpush2.bf16.msra.mxu0 %v574
        %666 = vmatprep.subr.bf16.mxu0 0
        %667 = vmatpush2.bf16.msra.mxu0 %v573
        %668 = vmatprep.subr.bf16.mxu0 0
        %669 = vmatpush2.bf16.msra.mxu0 %v572
        %670 = vmatprep.subr.bf16.mxu0 0
        %671 = vmatpush2.bf16.msra.mxu0 %v571
        %672 = vmatprep.subr.bf16.mxu0 0
        %673 = vmatpush2.bf16.msra.mxu0 %v570
        %674 = vmatprep.mubr.bf16.mxu0 %v393
        %675 = vmatmul.mubr.bf16.gmra.mxu0 %v392
        %v676 = vpop.f32.mrf.mxu0
        %v677 = vadd.f32 0.0, %v676
        %v678 = vpop.f32.mrf.mxu0
        %v679 = vpop.f32.mrf.mxu0
        %v680 = vadd.f32 0.0, %v679
        %v681 = vpop.f32.mrf.mxu0
        %682 = vdwg.mxu0
        %683 = vmatprep.subr.bf16.mxu0 0
        %684 = vmatpush1.bf16.msra.mxu0 %v585
        %685 = vmatprep.subr.bf16.mxu0 0
        %686 = vmatpush1.bf16.msra.mxu0 %v584
        %687 = vmatprep.subr.bf16.mxu0 0
        %688 = vmatpush1.bf16.msra.mxu0 %v583
        %689 = vmatprep.subr.bf16.mxu0 0
        %690 = vmatpush1.bf16.msra.mxu0 %v582
        %691 = vmatprep.subr.bf16.mxu0 0
        %692 = vmatpush1.bf16.msra.mxu0 %v581
        %693 = vmatprep.subr.bf16.mxu0 0
        %694 = vmatpush1.bf16.msra.mxu0 %v580
        %695 = vmatprep.subr.bf16.mxu0 0
        %696 = vmatpush1.bf16.msra.mxu0 %v579
        %697 = vmatprep.subr.bf16.mxu0 0
        %698 = vmatpush1.bf16.msra.mxu0 %v578
        %699 = vmatprep.subr.bf16.mxu0 0
        %700 = vmatpush2.bf16.msra.mxu0 %v593
        %701 = vmatprep.subr.bf16.mxu0 0
        %702 = vmatpush2.bf16.msra.mxu0 %v592
        %703 = vmatprep.subr.bf16.mxu0 0
        %704 = vmatpush2.bf16.msra.mxu0 %v591
        %705 = vmatprep.subr.bf16.mxu0 0
        %706 = vmatpush2.bf16.msra.mxu0 %v590
        %707 = vmatprep.subr.bf16.mxu0 0
        %708 = vmatpush2.bf16.msra.mxu0 %v589
        %709 = vmatprep.subr.bf16.mxu0 0
        %710 = vmatpush2.bf16.msra.mxu0 %v588
        %711 = vmatprep.subr.bf16.mxu0 0
        %712 = vmatpush2.bf16.msra.mxu0 %v587
        %713 = vmatprep.subr.bf16.mxu0 0
        %714 = vmatpush2.bf16.msra.mxu0 %v586
        %715 = vmatprep.mubr.bf16.mxu0 %v395
        %716 = vmatmul.mubr.bf16.gmra.mxu0 %v394
        %v717 = vpop.f32.mrf.mxu0
        %v718 = vadd.f32 %v677, %v717
        %v719 = vpop.f32.mrf.mxu0
        %v720 = vpop.f32.mrf.mxu0
        %v721 = vadd.f32 %v680, %v720
        %v722 = vpop.f32.mrf.mxu0
        %723 = vdwg.mxu0
        %724 = vmatprep.subr.bf16.mxu0 0
        %725 = vmatpush1.bf16.msra.mxu0 %v601
        %726 = vmatprep.subr.bf16.mxu0 0
        %727 = vmatpush1.bf16.msra.mxu0 %v600
        %728 = vmatprep.subr.bf16.mxu0 0
        %729 = vmatpush1.bf16.msra.mxu0 %v599
        %730 = vmatprep.subr.bf16.mxu0 0
        %731 = vmatpush1.bf16.msra.mxu0 %v598
        %732 = vmatprep.subr.bf16.mxu0 0
        %733 = vmatpush1.bf16.msra.mxu0 %v597
        %734 = vmatprep.subr.bf16.mxu0 0
        %735 = vmatpush1.bf16.msra.mxu0 %v596
        %736 = vmatprep.subr.bf16.mxu0 0
        %737 = vmatpush1.bf16.msra.mxu0 %v595
        %738 = vmatprep.subr.bf16.mxu0 0
        %739 = vmatpush1.bf16.msra.mxu0 %v594
        %740 = vmatprep.subr.bf16.mxu0 0
        %741 = vmatpush2.bf16.msra.mxu0 0
        %742 = vmatprep.subr.bf16.mxu0 0
        %743 = vmatpush2.bf16.msra.mxu0 0
        %744 = vmatprep.subr.bf16.mxu0 0
        %745 = vmatpush2.bf16.msra.mxu0 0
        %746 = vmatprep.subr.bf16.mxu0 0
        %747 = vmatpush2.bf16.msra.mxu0 0
        %748 = vmatprep.subr.bf16.mxu0 0
        %749 = vmatpush2.bf16.msra.mxu0 0
        %750 = vmatprep.subr.bf16.mxu0 0
        %751 = vmatpush2.bf16.msra.mxu0 0
        %752 = vmatprep.subr.bf16.mxu0 0
        %753 = vmatpush2.bf16.msra.mxu0 0
        %754 = vmatprep.subr.bf16.mxu0 0
        %755 = vmatpush2.bf16.msra.mxu0 0
        %756 = vmatprep.mubr.bf16.mxu0 0
        %757 = vmatmul.mubr.bf16.gmra.mxu0 %v396
        %v758 = vpop.f32.mrf.mxu0
        %v759 = vadd.f32 %v718, %v758
        %v760 = vpop.f32.mrf.mxu0
        %v761 = vpop.f32.mrf.mxu0
        %v762 = vadd.f32 %v721, %v761
        %v763 = vpop.f32.mrf.mxu0
        %764 = vdwg.mxu0
        %v765 = vadd.f32 %v288, %v759
        %v766 = vadd.f32 %v289, %v762
        %767 = vst [vmem:[#allocation2] sm:$0xff] %v765
        %768 = vst [vmem:[#allocation2 + $0x8] sm:$0xff] %v766
        // Predicated region
        $region41: #{_dynamic_linear_fwd.1} parent=31 // pred_check
          %p769 = pneg %p282
        $region42: #{_dynamic_linear_fwd.1} parent=31 // pred_check_branch
          %771 = sbr.rel (%p769) target = $region44
        $region43: #{_dynamic_linear_fwd.1} parent=31 // pred_region
          %v772 = vld [vmem:[#allocation2] sm:$0xff]
          %v773 = vld [vmem:[#allocation2 + $0x8] sm:$0xff]
          %v774 = vld [vmem:[%s279] sm:$0x1]
          %v776 = vlaneseq
          %v777 = vshrl.u32 %v776, 7
          %v778 = vsub.s32 0, %v777
          %v779 = vrot.slane %v774, %v778
          %v781 = vadd.f32 %v772, %v779
          %v782 = vadd.f32 %v773, %v779
          %783 = vst [vmem:[%s259] sm:$0xff] %v781
          %784 = vst [vmem:[%s259 + $0x8] sm:$0xff] %v782
        $region44: #{_dynamic_linear_fwd.1} parent=31 // pred_fallthru
          _
        %s785 = sand.u32 %s131, 1
        %s786 = scalar_lea.sflag [#allocation5], %s785
        %s787 = sand.u32 %s131, 1
        %s788 = smul.addr %s787, 16
        %s789 = scalar_lea.vmem [#allocation6], %s788
        // Predicated region
        $region45: #{_dynamic_linear_fwd.1} parent=31 // pred_check
          %p790 = pneg %p141
        $region46: #{_dynamic_linear_fwd.1} parent=31 // pred_check_branch
          %792 = sbr.rel (%p790) target = $region48
        $region47: #{_dynamic_linear_fwd.1} parent=31 // pred_region
          %s793 = smul.u32 2, %s25
          %s795 = ssub.s32 256, 256
          %796 = vsyncadd %s786, %s795
          %s797 = smul.addr %s793, 3
          %s798 = sadd.s32 %s26, %s797
          %s799 = smul.addr %s798, 128
          %s800 = scalar_lea.hbm %s3, %s799
          %s801 = sshll.u32 %s789, 4
          %s802 = int_to_ptr.vmem [resolvable:$true] %s801
          %807 = dma.vmem_to_hbm [thread:$0]  %s802, 256, %s800, %s786, 128, 384, 8
        $region48: #{_dynamic_linear_fwd.1} parent=31 // pred_fallthru
          _
      $region32: #{_dynamic_linear_fwd.1} parent=5 // pred_fallthru
        _
      %p808 = scmp.le.s32.totalorder 2, %s15
      // Predicated region
      $region49: #{_dynamic_linear_fwd.1} parent=5 // pred_check
        %p809 = pneg %p808
      $region50: #{_dynamic_linear_fwd.1} parent=5 // pred_check_branch
        %811 = sbr.rel (%p809) target = $region52
      $region51: #{_dynamic_linear_fwd.1} parent=5 // pred_region
        %s812 = ssub.s32 %s15, 2
        // Predicated region
        $region53: #{_dynamic_linear_fwd.1} parent=51 // pred_check
          %p813 = pneg %p147
        $region54: #{_dynamic_linear_fwd.1} parent=51 // pred_check_branch
          %815 = sbr.rel (%p813) target = $region56
        $region55: #{_dynamic_linear_fwd.1} parent=51 // pred_region
          %s816 = sand.u32 %s132, 1
          %s817 = scalar_lea.sflag [#allocation5], %s816
          %s818 = sand.u32 %s132, 1
          %s819 = smul.addr %s818, 16
          %s820 = scalar_lea.vmem [#allocation6], %s819
          %821 = dma.done %s817, 256
        $region56: #{_dynamic_linear_fwd.1} parent=51 // pred_fallthru
          _
      $region52: #{_dynamic_linear_fwd.1} parent=5 // pred_fallthru
        _
    $region6: #{_dynamic_linear_fwd.1} parent=1 // loop_footer
      %s19 = sadd.s32 1, %s15
    $region7: #{_dynamic_linear_fwd.1} parent=1 // loop_footer_branch
      %14 = sbr.rel target = $region3
    $region8: #{_dynamic_linear_fwd.1} parent=1 // loop_exit
      _
    %822 = vsyncpa [#allocation4], 1
    %s823 = scalar_lea.sflag [#allocation4], 1
    %824 = vsyncpa %s823, 1
    %825 = vsyncpa [#allocation5], 1
    %s826 = scalar_lea.sflag [#allocation5], 1
    %827 = vsyncpa %s826, 1

</llo_original>
